<compile_context>
chip_gen: v5e
topology: v5e:2x2
jax: 0.10.0
libtpu: 0.0.40
codegen_flags: <defaults>
</compile_context>

<pallas_src>
import jax
import jax.numpy as jnp
from jax.experimental import pallas as pl
from jax.experimental.pallas import tpu as pltpu

BN_EPS = 1e-5


def actor_td3_kernel(s_ref, w1_ref, w2_ref, w3_ref, w4_ref, pv_ref, out_ref):
    bf16 = jnp.bfloat16
    h1 = w1_ref.shape[1]
    h2 = w2_ref.shape[1]
    h3 = w3_ref.shape[1]
    out_pad = w4_ref.shape[1]

    # Packed 1-D params: one VMEM load, static slices afterwards.
    pv = pv_ref[...]                      # (8, PW) f32
    b1 = pv[0:1, :h1]
    b2 = pv[1:2, :h2]
    b3 = pv[2:3, :h3]
    gamma = pv[3:4, :h3]
    beta = pv[4:5, :h3]
    b4 = pv[5:6, :out_pad]

    x = s_ref[...]                        # (B, F) f32

    # Layer 1: Linear + ReLU  (bf16 MXU operands, f32 accumulate)
    h = jnp.dot(x.astype(bf16), w1_ref[...],
                preferred_element_type=jnp.float32) + b1
    h = jnp.maximum(h, 0.0)

    # Layer 2: Linear + ReLU
    h = jnp.dot(h.astype(bf16), w2_ref[...],
                preferred_element_type=jnp.float32) + b2
    h = jnp.maximum(h, 0.0)

    # Layer 3: Linear -> BatchNorm1d (training-mode batch stats, folded) -> ReLU
    h = jnp.dot(h.astype(bf16), w3_ref[...],
                preferred_element_type=jnp.float32) + b3
    mean = jnp.mean(h, axis=0, keepdims=True)
    var = jnp.mean((h - mean) ** 2, axis=0, keepdims=True)   # biased variance
    scale = gamma * jax.lax.rsqrt(var + BN_EPS)              # (1, h3)
    shift = beta - mean * scale                              # (1, h3)
    h = jnp.maximum(h * scale + shift, 0.0)

    # Layer 4: Linear + tanh (lane-dense padded output; padded lanes -> tanh(0)=0)
    y = jnp.dot(h.astype(bf16), w4_ref[...],
                preferred_element_type=jnp.float32) + b4
    out_ref[...] = jnp.tanh(y)


def _round_up(n, m):
    return ((n + m - 1) // m) * m


def pack_params(params):
    """One-time prep: transpose + bf16-cast weights, pack 1-D params, pad out dim."""
    h1 = params["w1"].shape[0]
    h2 = params["w2"].shape[0]
    h3 = params["w3"].shape[0]
    out_size = params["w4"].shape[0]
    out_pad = _round_up(out_size, 128)
    pw = max(out_pad, _round_up(max(h1, h2, h3), 128))

    w1 = params["w1"].T.astype(jnp.bfloat16)                 # (F, h1)
    w2 = params["w2"].T.astype(jnp.bfloat16)                 # (h1, h2)
    w3 = params["w3"].T.astype(jnp.bfloat16)                 # (h2, h3)
    w4 = jnp.zeros((h3, out_pad), jnp.bfloat16)
    w4 = w4.at[:, :out_size].set(params["w4"].T.astype(jnp.bfloat16))

    pvec = jnp.zeros((8, pw), jnp.float32)
    pvec = pvec.at[0, :h1].set(params["b1"])
    pvec = pvec.at[1, :h2].set(params["b2"])
    pvec = pvec.at[2, :h3].set(params["b3"])
    pvec = pvec.at[3, :h3].set(params["gamma"])
    pvec = pvec.at[4, :h3].set(params["beta"])
    pvec = pvec.at[5, :out_size].set(params["b4"])

    return {"w1": w1, "w2": w2, "w3": w3, "w4": w4, "pvec": pvec,
            "out_size": out_size, "out_pad": out_pad}


def actor_td3_forward(state, packed):
    """state: (B, input_size) f32.  packed: output of pack_params."""
    B = state.shape[0]
    out_pad = packed["out_pad"]
    out_size = packed["out_size"]

    args = (state, packed["w1"], packed["w2"], packed["w3"], packed["w4"],
            packed["pvec"])

    # All operands are rank-2 and tiny: full-array VMEM-resident blocks,
    # single grid point.  No closure capture in the index maps.
    in_specs = [pl.BlockSpec(a.shape, lambda: (0, 0), memory_space=pltpu.VMEM)
                for a in args]
    out_spec = pl.BlockSpec((B, out_pad), lambda: (0, 0),
                            memory_space=pltpu.VMEM)

    padded = pl.pallas_call(
        actor_td3_kernel,
        out_shape=jax.ShapeDtypeStruct((B, out_pad), jnp.float32),
        grid=(),
        in_specs=in_specs,
        out_specs=out_spec,
    )(*args)
    return padded[:, :out_size]


def init_params(key, input_size, hidden_size, output_size):
    """Deterministic synthetic init mirroring the module's parameter shapes."""
    h1, h2, h3 = hidden_size
    shapes = {
        "w1": (h1, input_size), "b1": (h1,),
        "w2": (h2, h1),         "b2": (h2,),
        "w3": (h3, h2),         "b3": (h3,),
        "w4": (output_size, h3), "b4": (output_size,),
    }
    params = {}
    for i, (name, shape) in enumerate(shapes.items()):
        k = jax.random.fold_in(key, i)
        fan_in = shape[-1] if len(shape) == 2 else shape[0]
        bound = 1.0 / jnp.sqrt(jnp.float32(fan_in))
        params[name] = jax.random.uniform(
            k, shape, dtype=jnp.float32, minval=-bound, maxval=bound)
    # BatchNorm1d affine params: gamma=1, beta=0 at init.
    params["gamma"] = jnp.ones((h3,), jnp.float32)
    params["beta"] = jnp.zeros((h3,), jnp.float32)
    return params


if __name__ == "__main__":
    key = jax.random.PRNGKey(0)

    input_size = 16
    hidden_size = (32, 64, 32)
    output_size = 8
    batch = 8

    params = init_params(jax.random.fold_in(key, 100),
                         input_size, hidden_size, output_size)
    state = jax.random.normal(jax.random.fold_in(key, 200),
                              (batch, input_size), dtype=jnp.float32)

    packed = pack_params(params)
    out = actor_td3_forward(state, packed)
    jax.block_until_ready(out)

    # Reference with the SAME numerics as the kernel (bf16 matmul operands,
    # f32 accumulation and elementwise) -- tight tolerance.
    def ref_bf16(x, p):
        bf = jnp.bfloat16
        a = jnp.dot(x.astype(bf), p["w1"].T.astype(bf),
                    preferred_element_type=jnp.float32) + p["b1"]
        a = jnp.maximum(a, 0.0)
        a = jnp.dot(a.astype(bf), p["w2"].T.astype(bf),
                    preferred_element_type=jnp.float32) + p["b2"]
        a = jnp.maximum(a, 0.0)
        a = jnp.dot(a.astype(bf), p["w3"].T.astype(bf),
                    preferred_element_type=jnp.float32) + p["b3"]
        m = jnp.mean(a, axis=0, keepdims=True)
        v = jnp.mean((a - m) ** 2, axis=0, keepdims=True)
        a = (a - m) * jax.lax.rsqrt(v + BN_EPS) * p["gamma"] + p["beta"]
        a = jnp.maximum(a, 0.0)
        a = jnp.dot(a.astype(bf), p["w4"].T.astype(bf),
                    preferred_element_type=jnp.float32) + p["b4"]
        return jnp.tanh(a)

    # Full-f32 module semantics -- loose sanity bound (bf16 matmul error).
    def ref_f32(x, p):
        a = jnp.maximum(x @ p["w1"].T + p["b1"], 0.0)
        a = jnp.maximum(a @ p["w2"].T + p["b2"], 0.0)
        a = a @ p["w3"].T + p["b3"]
        m = jnp.mean(a, axis=0, keepdims=True)
        v = jnp.mean((a - m) ** 2, axis=0, keepdims=True)
        a = (a - m) / jnp.sqrt(v + BN_EPS) * p["gamma"] + p["beta"]
        a = jnp.maximum(a, 0.0)
        return jnp.tanh(a @ p["w4"].T + p["b4"])

    expected = ref_bf16(state, params)
    expected_f32 = ref_f32(state, params)

    assert out.shape == (batch, output_size)
    assert jnp.allclose(out, expected, atol=1e-3, rtol=1e-3)
    assert jnp.allclose(out, expected_f32, atol=1e-1)

    print("KERNEL_OK")
</pallas_src>

<mosaic_0001>
module attributes {stable_mosaic.version = 11 : i64} {
  func.func @actor_td3_kernel(%arg0: memref<8x16xf32, #tpu.memory_space<vmem>>, %arg1: memref<16x32xbf16, #tpu.memory_space<vmem>>, %arg2: memref<32x64xbf16, #tpu.memory_space<vmem>>, %arg3: memref<64x32xbf16, #tpu.memory_space<vmem>>, %arg4: memref<32x128xbf16, #tpu.memory_space<vmem>>, %arg5: memref<8x128xf32, #tpu.memory_space<vmem>>, %arg6: memref<8x128xf32, #tpu.memory_space<vmem>>) attributes {dimension_semantics = [], scalar_prefetch = 0 : i64, scratch_operands = 0 : i64, tpu.core_type = #tpu.core_type<tc>} {
    %c0 = arith.constant 0 : index
    %c0_0 = arith.constant 0 : index
    %0 = vector.load %arg5[%c0, %c0_0] : memref<8x128xf32, #tpu.memory_space<vmem>>, vector<8x128xf32>
    %1 = vector.extract_strided_slice %0 {offsets = [0, 0], sizes = [1, 32], strides = [1, 1]} : vector<8x128xf32> to vector<1x32xf32>
    %2 = vector.extract_strided_slice %0 {offsets = [1, 0], sizes = [1, 64], strides = [1, 1]} : vector<8x128xf32> to vector<1x64xf32>
    %3 = vector.extract_strided_slice %0 {offsets = [2, 0], sizes = [1, 32], strides = [1, 1]} : vector<8x128xf32> to vector<1x32xf32>
    %4 = vector.extract_strided_slice %0 {offsets = [3, 0], sizes = [1, 32], strides = [1, 1]} : vector<8x128xf32> to vector<1x32xf32>
    %5 = vector.extract_strided_slice %0 {offsets = [4, 0], sizes = [1, 32], strides = [1, 1]} : vector<8x128xf32> to vector<1x32xf32>
    %6 = vector.extract_strided_slice %0 {offsets = [5, 0], sizes = [1, 128], strides = [1, 1]} : vector<8x128xf32> to vector<1x128xf32>
    %c0_1 = arith.constant 0 : index
    %c0_2 = arith.constant 0 : index
    %7 = vector.load %arg0[%c0_1, %c0_2] : memref<8x16xf32, #tpu.memory_space<vmem>>, vector<8x16xf32>
    %8 = arith.truncf %7 : vector<8x16xf32> to vector<8x16xbf16>
    %c0_3 = arith.constant 0 : index
    %c0_4 = arith.constant 0 : index
    %9 = vector.load %arg1[%c0_3, %c0_4] : memref<16x32xbf16, #tpu.memory_space<vmem>>, vector<16x32xbf16>
    %cst = arith.constant dense<0.000000e+00> : vector<8x32xf32>
    %10 = tpu.matmul %8, %9, %cst {dimension_numbers = #tpu.dot_dimension_numbers<[1], [0], [0], [1], [0, 0, 1, 1], [], []>} : vector<8x16xbf16>, vector<16x32xbf16>, vector<8x32xf32> -> vector<8x32xf32>
    %11 = vector.broadcast %1 : vector<1x32xf32> to vector<8x32xf32>
    %12 = arith.addf %10, %11 : vector<8x32xf32>
    %cst_5 = arith.constant 0.000000e+00 : f32
    %13 = vector.broadcast %cst_5 : f32 to vector<8x32xf32>
    %14 = arith.maximumf %12, %13 : vector<8x32xf32>
    %15 = arith.truncf %14 : vector<8x32xf32> to vector<8x32xbf16>
    %c0_6 = arith.constant 0 : index
    %c0_7 = arith.constant 0 : index
    %16 = vector.load %arg2[%c0_6, %c0_7] : memref<32x64xbf16, #tpu.memory_space<vmem>>, vector<32x64xbf16>
    %cst_8 = arith.constant dense<0.000000e+00> : vector<8x64xf32>
    %17 = tpu.matmul %15, %16, %cst_8 {dimension_numbers = #tpu.dot_dimension_numbers<[1], [0], [0], [1], [0, 0, 1, 1], [], []>} : vector<8x32xbf16>, vector<32x64xbf16>, vector<8x64xf32> -> vector<8x64xf32>
    %18 = vector.broadcast %2 : vector<1x64xf32> to vector<8x64xf32>
    %19 = arith.addf %17, %18 : vector<8x64xf32>
    %cst_9 = arith.constant 0.000000e+00 : f32
    %20 = vector.broadcast %cst_9 : f32 to vector<8x64xf32>
    %21 = arith.maximumf %19, %20 : vector<8x64xf32>
    %22 = arith.truncf %21 : vector<8x64xf32> to vector<8x64xbf16>
    %c0_10 = arith.constant 0 : index
    %c0_11 = arith.constant 0 : index
    %23 = vector.load %arg3[%c0_10, %c0_11] : memref<64x32xbf16, #tpu.memory_space<vmem>>, vector<64x32xbf16>
    %cst_12 = arith.constant dense<0.000000e+00> : vector<8x32xf32>
    %24 = tpu.matmul %22, %23, %cst_12 {dimension_numbers = #tpu.dot_dimension_numbers<[1], [0], [0], [1], [0, 0, 1, 1], [], []>} : vector<8x64xbf16>, vector<64x32xbf16>, vector<8x32xf32> -> vector<8x32xf32>
    %25 = vector.broadcast %3 : vector<1x32xf32> to vector<8x32xf32>
    %26 = arith.addf %24, %25 : vector<8x32xf32>
    %cst_13 = arith.constant dense<0.000000e+00> : vector<32xf32>
    %27 = vector.multi_reduction <add>, %26, %cst_13 [0] : vector<8x32xf32> to vector<32xf32>
    %28 = vector.shape_cast %27 : vector<32xf32> to vector<1x32xf32>
    %cst_14 = arith.constant 8.000000e+00 : f32
    %29 = vector.broadcast %cst_14 : f32 to vector<1x32xf32>
    %30 = arith.divf %28, %29 : vector<1x32xf32>
    %31 = vector.broadcast %30 : vector<1x32xf32> to vector<8x32xf32>
    %32 = arith.subf %26, %31 : vector<8x32xf32>
    %33 = arith.mulf %32, %32 : vector<8x32xf32>
    %cst_15 = arith.constant dense<0.000000e+00> : vector<32xf32>
    %34 = vector.multi_reduction <add>, %33, %cst_15 [0] : vector<8x32xf32> to vector<32xf32>
    %35 = vector.shape_cast %34 : vector<32xf32> to vector<1x32xf32>
    %cst_16 = arith.constant 8.000000e+00 : f32
    %36 = vector.broadcast %cst_16 : f32 to vector<1x32xf32>
    %37 = arith.divf %35, %36 : vector<1x32xf32>
    %cst_17 = arith.constant 9.99999974E-6 : f32
    %38 = vector.broadcast %cst_17 : f32 to vector<1x32xf32>
    %39 = arith.addf %37, %38 : vector<1x32xf32>
    %40 = math.rsqrt %39 : vector<1x32xf32>
    %41 = arith.mulf %4, %40 : vector<1x32xf32>
    %42 = arith.mulf %30, %41 : vector<1x32xf32>
    %43 = arith.subf %5, %42 : vector<1x32xf32>
    %44 = vector.broadcast %41 : vector<1x32xf32> to vector<8x32xf32>
    %45 = arith.mulf %26, %44 : vector<8x32xf32>
    %46 = vector.broadcast %43 : vector<1x32xf32> to vector<8x32xf32>
    %47 = arith.addf %45, %46 : vector<8x32xf32>
    %cst_18 = arith.constant 0.000000e+00 : f32
    %48 = vector.broadcast %cst_18 : f32 to vector<8x32xf32>
    %49 = arith.maximumf %47, %48 : vector<8x32xf32>
    %50 = arith.truncf %49 : vector<8x32xf32> to vector<8x32xbf16>
    %c0_19 = arith.constant 0 : index
    %c0_20 = arith.constant 0 : index
    %51 = vector.load %arg4[%c0_19, %c0_20] : memref<32x128xbf16, #tpu.memory_space<vmem>>, vector<32x128xbf16>
    %cst_21 = arith.constant dense<0.000000e+00> : vector<8x128xf32>
    %52 = tpu.matmul %50, %51, %cst_21 {dimension_numbers = #tpu.dot_dimension_numbers<[1], [0], [0], [1], [0, 0, 1, 1], [], []>} : vector<8x32xbf16>, vector<32x128xbf16>, vector<8x128xf32> -> vector<8x128xf32>
    %53 = vector.broadcast %6 : vector<1x128xf32> to vector<8x128xf32>
    %54 = arith.addf %52, %53 : vector<8x128xf32>
    %55 = math.tanh %54 : vector<8x128xf32>
    %c0_22 = arith.constant 0 : index
    %c0_23 = arith.constant 0 : index
    %56 = vector.load %arg6[%c0_22, %c0_23] : memref<8x128xf32, #tpu.memory_space<vmem>>, vector<8x128xf32>
    tpu.vector_store %arg6[%c0_22, %c0_23], %55 {strides = array<i32>} : memref<8x128xf32, #tpu.memory_space<vmem>>, vector<8x128xf32>,
    return
  }
}

</mosaic_0001>

<llo_original>
// kernel: tpu_custom_call.1
$region0: #{tpu_custom_call.1}
  #allocation0 [shape = 'u32[]', space=smem, size = 0x4, offset = 0x4, fixed_abs, tag = 'smem constant byte address 0x4 - core index']
  #allocation1 [shape = 'u32[72,128]{1,0:T(1,128)}', space=vmem, size = 0x9000, scoped, tag = 'internal scratch']
  %s0 = inlined_call_operand.vmem [shape: f32[8,16], index: 0, kind: input, shape index: {}]
  %s1 = inlined_call_operand.vmem [shape: bf16[16,32], index: 1, kind: input, shape index: {}]
  %s2 = inlined_call_operand.vmem [shape: bf16[32,64], index: 2, kind: input, shape index: {}]
  %s3 = inlined_call_operand.vmem [shape: bf16[64,32], index: 3, kind: input, shape index: {}]
  %s4 = inlined_call_operand.vmem [shape: bf16[32,128], index: 4, kind: input, shape index: {}]
  %s5 = inlined_call_operand.hbm [shape: f32[8,128], index: 5, kind: input, shape index: {}]
  %s6 = inlined_call_operand.hbm [shape: f32[8,128], index: 6, kind: output, shape index: {}]
  %s7 = sld [smem:[#allocation0]]
  $region38: #{tpu_custom_call.1} parent=0
    _
  %s9 = ssub.s32 1, %s7
  %s10 = scalar_select 0, %s9, %s7
  $region1: #{tpu_custom_call.1} parent=0
    #allocation2 [shape = 'u8[4096]{0}', space=vmem, size = 0x1000, scoped, tag = 'input window, operand 5, single buffered']
    #allocation3 [shape = 's32[1]{0}', space=sflag, size = 0x4, scoped, tag = 'scoped memory for tpu_custom_call.1']
    #allocation4 [shape = 's32[1]{0}', space=sflag, size = 0x4, scoped, tag = 'scoped memory for tpu_custom_call.1']
    #allocation5 [shape = 'u8[4096]{0}', space=vmem, size = 0x1000, scoped, tag = 'output window, operand 0, single buffered']
    %11 = vsyncpa [#allocation3], 0
    %12 = vsyncpa [#allocation4], 0
    // Predicated region
    $region2: #{tpu_custom_call.1} parent=1 // pred_check
      _
    $region3: #{tpu_custom_call.1} parent=1 // pred_check_branch
      %14 = sbr.rel (0) target = $region5
    $region4: #{tpu_custom_call.1} parent=1 // pred_region
      _
    $region5: #{tpu_custom_call.1} parent=1 // pred_fallthru
      _
    // Predicated region
    $region6: #{tpu_custom_call.1} parent=1 // pred_check
      _
    $region7: #{tpu_custom_call.1} parent=1 // pred_check_branch
      %16 = sbr.rel (0) target = $region9
    $region8: #{tpu_custom_call.1} parent=1 // pred_region
      _
    $region9: #{tpu_custom_call.1} parent=1 // pred_fallthru
      _
    // Predicated region
    $region10: #{tpu_custom_call.1} parent=1 // pred_check
      _
    $region11: #{tpu_custom_call.1} parent=1 // pred_check_branch
      %18 = sbr.rel (0) target = $region13
    $region12: #{tpu_custom_call.1} parent=1 // pred_region
      _
    $region13: #{tpu_custom_call.1} parent=1 // pred_fallthru
      _
    // Predicated region
    $region14: #{tpu_custom_call.1} parent=1 // pred_check
      _
    $region15: #{tpu_custom_call.1} parent=1 // pred_check_branch
      %20 = sbr.rel (0) target = $region17
    $region16: #{tpu_custom_call.1} parent=1 // pred_region
      _
    $region17: #{tpu_custom_call.1} parent=1 // pred_fallthru
      _
    // Predicated region
    $region18: #{tpu_custom_call.1} parent=1 // pred_check
      _
    $region19: #{tpu_custom_call.1} parent=1 // pred_check_branch
      %22 = sbr.rel (0) target = $region21
    $region20: #{tpu_custom_call.1} parent=1 // pred_region
      _
    $region21: #{tpu_custom_call.1} parent=1 // pred_fallthru
      _
    // Predicated region
    $region22: #{tpu_custom_call.1} parent=1 // pred_check
      _
    $region23: #{tpu_custom_call.1} parent=1 // pred_check_branch
      %24 = sbr.rel (0) target = $region25
    $region24: #{tpu_custom_call.1} parent=1 // pred_region
      %26 = vsyncadd [#allocation3], 0
      %s28 = sshll.u32 %s5, 4
      %s29 = int_to_ptr.hbm [resolvable:$true] %s28
      %s30 = sshll.u32 [#allocation2], 4
      %s31 = int_to_ptr.vmem [resolvable:$true] %s30
      %33 = dma.hbm_to_vmem [thread:$0]  %s29, 128, %s31, [#allocation3]
    $region25: #{tpu_custom_call.1} parent=1 // pred_fallthru
      _
    // Predicated region
    $region26: #{tpu_custom_call.1} parent=1 // pred_check
      _
    $region27: #{tpu_custom_call.1} parent=1 // pred_check_branch
      %35 = sbr.rel (0) target = $region29
    $region28: #{tpu_custom_call.1} parent=1 // pred_region
      %37 = dma.done [#allocation3], 128
    $region29: #{tpu_custom_call.1} parent=1 // pred_fallthru
      _
    %v39 = vld [vmem:[#allocation2] sm:$0xff]
    %v40 = vld [vmem:[%s0] sm:$0xff]
    %v41 = vpack.c.bf16 %v40, %v40
    %v42 = vld [vmem:[%s1] sm:$0xf]
    %v43 = vld [vmem:[%s1 + $0x4] sm:$0xf]
    %v44 = vperm.slane %v39, 0
    %v47 = vunpack.c.l.b16 %v42
    %v48 = vunpack.c.l.b16 %v43
    %v49 = vpack.c.b16 %v48, %v47
    %vm51 = vcmask 130048
    %v53 = vsel %vm51, %v41, 0
    %55 = vmatpush.bf16.msra.mxu0 0
    %56 = vmatpush.bf16.msra.mxu0 0
    %57 = vmatpush.bf16.msra.mxu0 0
    %58 = vmatpush.bf16.msra.mxu0 0
    %59 = vmatpush.bf16.msra.mxu0 0
    %60 = vmatpush.bf16.msra.mxu0 0
    %61 = vmatpush.bf16.msra.mxu0 0
    %62 = vmatpush.bf16.msra.mxu0 %v49
    %63 = vmatmul.bf16.gmra.mxu0 %v53
    %v64 = vpop.f32.mrf.mxu0
    %v65 = vadd.f32 %v44, %v64
    %v66 = vpop.f32.mrf.mxu0
    %67 = vdwg.mxu0
    %v68 = vmax.f32 %v65, 0.0
    %v69 = vpack.c.bf16 %v68, %v68
    %v70 = vld [vmem:[%s2] sm:$0xf]
    %v71 = vld [vmem:[%s2 + $0x4] sm:$0xf]
    %v72 = vld [vmem:[%s2 + $0x8] sm:$0xf]
    %v73 = vld [vmem:[%s2 + $0xc] sm:$0xf]
    %v74 = vperm.slane %v39, 1
    %v79 = vunpack.c.l.b16 %v70
    %v80 = vunpack.c.l.b16 %v71
    %v81 = vunpack.c.l.b16 %v72
    %v82 = vunpack.c.l.b16 %v73
    %v83 = vpack.c.b16 %v80, %v79
    %v84 = vpack.c.b16 %v82, %v81
    %vm87 = vcmask 261120
    %v89 = vsel %vm87, %v69, 0
    %91 = vmatpush.bf16.msra.mxu0 0
    %92 = vmatpush.bf16.msra.mxu0 0
    %93 = vmatpush.bf16.msra.mxu0 0
    %94 = vmatpush.bf16.msra.mxu0 0
    %95 = vmatpush.bf16.msra.mxu0 0
    %96 = vmatpush.bf16.msra.mxu0 0
    %97 = vmatpush.bf16.msra.mxu0 %v84
    %98 = vmatpush.bf16.msra.mxu0 %v83
    %99 = vmatmul.bf16.gmra.mxu0 %v89
    %v100 = vpop.f32.mrf.mxu0
    %v101 = vadd.f32 %v74, %v100
    %v102 = vpop.f32.mrf.mxu0
    %103 = vdwg.mxu0
    %v104 = vmax.f32 %v101, 0.0
    %v105 = vpack.c.bf16 %v104, %v104
    %v106 = vld [vmem:[%s3] sm:$0xf]
    %v107 = vld [vmem:[%s3 + $0x4] sm:$0xf]
    %v108 = vld [vmem:[%s3 + $0x8] sm:$0xf]
    %v109 = vld [vmem:[%s3 + $0xc] sm:$0xf]
    %v110 = vld [vmem:[%s3 + $0x10] sm:$0xf]
    %v111 = vld [vmem:[%s3 + $0x14] sm:$0xf]
    %v112 = vld [vmem:[%s3 + $0x18] sm:$0xf]
    %v113 = vld [vmem:[%s3 + $0x1c] sm:$0xf]
    %v114 = vperm.slane %v39, 2
    %v123 = vunpack.c.l.b16 %v106
    %v124 = vunpack.c.l.b16 %v107
    %v125 = vunpack.c.l.b16 %v108
    %v126 = vunpack.c.l.b16 %v109
    %v127 = vunpack.c.l.b16 %v110
    %v128 = vunpack.c.l.b16 %v111
    %v129 = vunpack.c.l.b16 %v112
    %v130 = vunpack.c.l.b16 %v113
    %v131 = vpack.c.b16 %v124, %v123
    %v132 = vpack.c.b16 %v126, %v125
    %v133 = vpack.c.b16 %v128, %v127
    %v134 = vpack.c.b16 %v130, %v129
    %vm139 = vcmask 523264
    %v141 = vsel %vm139, %v105, 0
    %143 = vmatpush.bf16.msra.mxu0 0
    %144 = vmatpush.bf16.msra.mxu0 0
    %145 = vmatpush.bf16.msra.mxu0 0
    %146 = vmatpush.bf16.msra.mxu0 0
    %147 = vmatpush.bf16.msra.mxu0 %v134
    %148 = vmatpush.bf16.msra.mxu0 %v133
    %149 = vmatpush.bf16.msra.mxu0 %v132
    %150 = vmatpush.bf16.msra.mxu0 %v131
    %151 = vmatmul.bf16.gmra.mxu0 %v141
    %v152 = vpop.f32.mrf.mxu0
    %v153 = vadd.f32 %v114, %v152
    %v154 = vpop.f32.mrf.mxu0
    %155 = vdwg.mxu0
    %v156 = vsel %vm87, %v153, 0.0
    %v157 = vrot.slane %v156, 4
    %v158 = vadd.f32 %v156, %v157
    %v159 = vrot.slane %v158, 2
    %v160 = vadd.f32 %v158, %v159
    %v161 = vrot.slane %v160, 1
    %v162 = vadd.f32 %v160, %v161
    %v163 = vrcp.pop 8.0
    %v164 = vmul.f32 8.0, %v163
    %v165 = vsub.f32 1.0, %v164
    %v166 = vmul.f32 %v163, %v165
    %v167 = vadd.f32 %v163, %v166
    %vm168 = vweird.f32 %v163
    %v169 = vsel %vm168, %v163, %v167
    %v170 = vmul.f32 %v162, %v169
    %v171 = vsub.f32 %v153, %v170
    %v172 = vmul.f32 %v171, %v171
    %v173 = vsel %vm87, %v172, 0.0
    %v174 = vrot.slane %v173, 4
    %v175 = vadd.f32 %v173, %v174
    %v176 = vrot.slane %v175, 2
    %v177 = vadd.f32 %v175, %v176
    %v178 = vrot.slane %v177, 1
    %v179 = vadd.f32 %v177, %v178
    %v180 = vmul.f32 %v179, %v169
    %v181 = vadd.f32 %v180, 1e-05
    %v182 = vrsqrt.pop %v181
    %v183 = vmul.f32 %v182, %v181
    %v184 = vmul.f32 %v183, %v182
    %v185 = vmul.f32 0.5, %v184
    %v186 = vsub.f32 1.5, %v185
    %v187 = vmul.f32 %v182, %v186
    %vm188 = vweird.f32 %v181
    %vm189 = vweird.f32 %v182
    %vm190 = vmor %vm188, %vm189
    %v191 = vsel %vm190, %v182, %v187
    %v192 = vmul.f32 %v39, %v191
    %v193 = vmul.f32 %v170, %v192
    %v195 = vrot.slane %v193, 7
    %v197 = vsub.f32 %v39, %v195
    %v198 = vperm.slane %v192, 3
    %v199 = vmul.f32 %v153, %v198
    %v200 = vperm.slane %v197, 4
    %v201 = vadd.f32 %v199, %v200
    %v202 = vmax.f32 %v201, 0.0
    %v203 = vpack.c.bf16 %v202, %v202
    %v204 = vld [vmem:[%s4] sm:$0xf]
    %v205 = vld [vmem:[%s4 + $0x4] sm:$0xf]
    %v206 = vld [vmem:[%s4 + $0x8] sm:$0xf]
    %v207 = vld [vmem:[%s4 + $0xc] sm:$0xf]
    %v208 = vperm.slane %v39, 5
    %v213 = vunpack.c.l.b16 %v204
    %v214 = vunpack.c.l.b16 %v205
    %v215 = vunpack.c.l.b16 %v206
    %v216 = vunpack.c.l.b16 %v207
    %v217 = vpack.c.b16 %v214, %v213
    %v218 = vpack.c.b16 %v216, %v215
    %v222 = vsel %vm87, %v203, 0
    %224 = vmatpush.bf16.msra.mxu0 0
    %225 = vmatpush.bf16.msra.mxu0 0
    %226 = vmatpush.bf16.msra.mxu0 0
    %227 = vmatpush.bf16.msra.mxu0 0
    %228 = vmatpush.bf16.msra.mxu0 0
    %229 = vmatpush.bf16.msra.mxu0 0
    %230 = vmatpush.bf16.msra.mxu0 %v218
    %231 = vmatpush.bf16.msra.mxu0 %v217
    %232 = vmatmul.bf16.gmra.mxu0 %v222
    %v233 = vpop.f32.mrf.mxu0
    %v234 = vadd.f32 %v208, %v233
    %v235 = vpop.f32.mrf.mxu0
    %236 = vdwg.mxu0
    %v237 = vtanh.pop %v234
    %238 = vst [vmem:[#allocation5] sm:$0xff] %v237
    // Predicated region
    $region30: #{tpu_custom_call.1} parent=1 // pred_check
      _
    $region31: #{tpu_custom_call.1} parent=1 // pred_check_branch
      %240 = sbr.rel (0) target = $region33
    $region32: #{tpu_custom_call.1} parent=1 // pred_region
      %242 = vsyncadd [#allocation4], 0
      %s244 = sshll.u32 [#allocation5], 4
      %s245 = int_to_ptr.vmem [resolvable:$true] %s244
      %s246 = sshll.u32 %s6, 4
      %s247 = int_to_ptr.hbm [resolvable:$true] %s246
      %249 = dma.vmem_to_hbm [thread:$0]  %s245, 128, %s247, [#allocation4]
    $region33: #{tpu_custom_call.1} parent=1 // pred_fallthru
      _
    // Predicated region
    $region34: #{tpu_custom_call.1} parent=1 // pred_check
      _
    $region35: #{tpu_custom_call.1} parent=1 // pred_check_branch
      %251 = sbr.rel (0) target = $region37
    $region36: #{tpu_custom_call.1} parent=1 // pred_region
      %253 = dma.done [#allocation4], 128
    $region37: #{tpu_custom_call.1} parent=1 // pred_fallthru
      _
    %254 = vsyncpa [#allocation3], 1
    %255 = vsyncpa [#allocation4], 1

</llo_original>
